<compile_context>
chip_gen: v6e
topology: v6e:2x2x1
jax: 0.10.0
libtpu: 0.0.40
codegen_flags: <defaults>
</compile_context>

<pallas_src>
import jax
import jax.numpy as jnp
import numpy as np
from jax.experimental import pallas as pl
from jax.experimental.pallas import tpu as pltpu

# ---------------- model hyperparameters (small, consistent with the module) ----
VOCAB = 50
EMB = 128            # embedding_dim
HID = 16             # hidden_dim
NCLS = 4             # num_classes
NCH = 8              # conv out_channels
SEQ_LEN = 8          # L

LANES = 128          # TPU lane width (gate / logit padding target)
SUBLANES = 8         # full f32 vreg sublane count
NEG_FILL = -1e9      # softmax mask for padded logit lanes (exp -> 0)

# ---- packed constant-slab row layout (all rows are 128 lanes wide) ------------
W_EFF_ROW = 0                    # rows [0, 128)   : fused conv+LSTM input weights
W_OUT_ROW = EMB                  # rows [128, 256) : W_out^T zero-padded to 128x128
B_EFF_ROW = 2 * EMB              # row 256         : fused gate bias
B_OUT_ROW = 2 * EMB + 8          # row 264         : output bias (-1e9 padding)
SLAB_ROWS = 2 * EMB + 16         # 272 rows total (tile-aligned)


def cnn_lstm_kernel(seq_ref, emb_row_ref, slab_ref, out_ref):
    # seq_ref (SMEM scalar prefetch) is consumed by the embedding BlockSpec's
    # index_map (data-dependent row gather); not needed in the body.
    del seq_ref

    e_last = emb_row_ref[0]                                   # (1, E) = emb[seq[-1]]

    # Static views into the single packed weight slab (one DMA for everything).
    w_eff = slab_ref[W_EFF_ROW:W_EFF_ROW + EMB, :]            # (128, 128)
    w_out = slab_ref[W_OUT_ROW:W_OUT_ROW + LANES, :]          # (128, 128)
    b_eff = slab_ref[B_EFF_ROW:B_EFF_ROW + 1, :]              # (1, 128)
    b_out = slab_ref[B_OUT_ROW:B_OUT_ROW + 1, :]              # (1, 128)

    # Fused Conv1d + LSTM input projection (gate lanes: [i | g | o | 0 | o | g]).
    gates = jnp.dot(e_last, w_eff, preferred_element_type=jnp.float32)
    gates = gates + b_eff.astype(jnp.float32)                 # (1, 128) f32
    gates = jnp.broadcast_to(gates, (SUBLANES, LANES))        # one full f32 vreg

    # Full-vreg nonlinearities (EUP), alignment on the XLU, masking on the VPU.
    sig = jax.nn.sigmoid(gates)                               # i @ [0,H), o @ [2H,3H)&[96,112)
    th = jnp.tanh(gates)                                      # g @ [H,2H) & [112,128)
    g_al = pltpu.roll(th, shift=LANES - HID, axis=1)          # g -> lanes [0, H)
    o_al = pltpu.roll(sig, shift=LANES - 2 * HID, axis=1)     # o -> lanes [0, H)

    c = sig * g_al                       # forget gate omitted exactly: it multiplies c0 == 0
    h = o_al * jnp.tanh(c)               # lanes [0, H) hold h_{L-1}
    lane = jax.lax.broadcasted_iota(jnp.int32, (SUBLANES, LANES), 1)
    h = jnp.where(lane < HID, h, 0.0)    # zero garbage lanes (W_out rows there are 0 anyway)

    # TODO(synk): nn.Dropout(p=0.5) is implemented as identity (inference mode).
    logits = jnp.dot(h.astype(w_out.dtype), w_out,
                     preferred_element_type=jnp.float32)      # (8, 128)
    logits = logits + b_out.astype(jnp.float32)               # padded lanes -> -1e9

    m = jnp.max(logits, axis=-1, keepdims=True)
    p = jnp.exp(logits - m)                                   # padded lanes -> 0
    out_ref[...] = p / jnp.sum(p, axis=-1, keepdims=True)


def _pack_gate_lanes(x_i, x_g, x_o):
    """Lane layout [ i | g | o | zeros | o | g ] (width 128).

    The duplicated o/g blocks make the in-kernel roll alignment independent of the
    rotate-direction convention; the redundant lanes are masked out downstream.
    """
    mid = jnp.zeros(x_i.shape[:-1] + (LANES - 5 * HID,), x_i.dtype)
    return jnp.concatenate([x_i, x_g, x_o, mid, x_o, x_g], axis=-1)


def prepare_params(params, dtype=jnp.bfloat16):
    """One-time parameter folding + packing (kept OUT of the per-call path)."""
    emb_table, conv_w, conv_b, w_ih, b_ih, b_hh, w_out, b_out = params

    # w_ih: (4H, 8*E) viewed as (4H, 8, E); move gate dim last -> (8, E, 4H).
    w3 = w_ih.reshape(4 * HID, NCH, EMB)
    w3t = jnp.transpose(w3, (1, 2, 0))                        # (8, E, 4H)

    def shift_e(x, s):
        # result[:, e, :] = x[:, e - s, :], zero-filled outside [0, E).
        if s == 0:
            return x
        if s > 0:
            return jnp.pad(x[:, :EMB - s, :], ((0, 0), (s, 0), (0, 0)))
        return jnp.pad(x[:, -s:, :], ((0, 0), (0, -s), (0, 0)))

    # Fold Conv1d(in=1, out=8, k=3, pad=1) into the gate weights:
    #   W_eff[e, j] = sum_{oc,k} conv_w[oc, k] * w3t[oc, e + 1 - k, j]
    w_eff_full = (conv_w[:, 0][:, None, None] * shift_e(w3t, -1)
                  + conv_w[:, 1][:, None, None] * w3t
                  + conv_w[:, 2][:, None, None] * shift_e(w3t, 1)).sum(axis=0)   # (E, 4H)
    b_eff_full = b_ih + b_hh + w3.sum(axis=2) @ conv_b        # (4H,)

    # Keep only [i | g | o] (forget gate is dead because c0 == 0); pack to 128 lanes.
    w_eff = _pack_gate_lanes(w_eff_full[:, 0:HID],
                             w_eff_full[:, 2 * HID:3 * HID],
                             w_eff_full[:, 3 * HID:4 * HID])  # (E, 128)
    b_eff = _pack_gate_lanes(b_eff_full[0:HID],
                             b_eff_full[2 * HID:3 * HID],
                             b_eff_full[3 * HID:4 * HID])     # (128,)

    # Output projection, zero-padded to a 128x128 matmul; bias padded with -1e9.
    w_out_pad = jnp.zeros((LANES, LANES), jnp.float32).at[:HID, :NCLS].set(w_out.T)
    b_out_pad = jnp.full((LANES,), NEG_FILL, jnp.float32).at[:NCLS].set(b_out)

    slab = jnp.zeros((SLAB_ROWS, LANES), jnp.float32)
    slab = slab.at[W_EFF_ROW:W_EFF_ROW + EMB].set(w_eff)
    slab = slab.at[W_OUT_ROW:W_OUT_ROW + LANES].set(w_out_pad)
    slab = slab.at[B_EFF_ROW].set(b_eff)
    slab = slab.at[B_OUT_ROW].set(b_out_pad)

    # Reshape the embedding table so the gathered block (1, 1, E) matches the full
    # last-two dims.
    emb_r = emb_table.reshape(VOCAB, 1, EMB)
    return emb_r.astype(dtype), slab.astype(dtype)


@jax.jit
def cnn_lstm_forward(seq, prepped):
    emb_r, slab = prepped
    itemsize = np.dtype(slab.dtype).itemsize
    grid_spec = pltpu.PrefetchScalarGridSpec(
        num_scalar_prefetch=1,
        grid=(1,),
        in_specs=[
            # Data-dependent gather: DMA only emb_table[seq[-1]] (one row).
            pl.BlockSpec((1, 1, EMB), lambda i, seq_ref: (seq_ref[SEQ_LEN - 1], 0, 0)),
            # Single lane-dense constant slab: one DMA for all weights/biases.
            pl.BlockSpec((SLAB_ROWS, LANES), lambda i, seq_ref: (0, 0)),
        ],
        out_specs=pl.BlockSpec((SUBLANES, LANES), lambda i, seq_ref: (0, 0)),
    )
    out = pl.pallas_call(
        cnn_lstm_kernel,
        out_shape=jax.ShapeDtypeStruct((SUBLANES, LANES), jnp.float32),
        grid_spec=grid_spec,
        compiler_params=pltpu.CompilerParams(dimension_semantics=("arbitrary",)),
        cost_estimate=pl.CostEstimate(
            flops=2 * EMB * LANES + 2 * SUBLANES * LANES * LANES,
            transcendentals=4 * SUBLANES * LANES,
            bytes_accessed=(SLAB_ROWS * LANES + EMB) * itemsize
                           + SUBLANES * LANES * 4),
    )(seq, emb_r, slab)
    # Lane-dense (8,128) kernel output; the model's result is row 0, first NCLS lanes.
    return out[0:1, :NCLS]


def reference_forward(seq, params):
    """Pure-JAX f32 reference mirroring the PyTorch forward (eval mode)."""
    (emb_table, conv_w, conv_b, w_ih, b_ih, b_hh, w_out, b_out) = params
    embs = emb_table[seq]                                        # (L, E)
    pad = jnp.pad(embs, ((0, 0), (1, 1)))                        # (L, E+2)
    conv = jnp.stack(
        [conv_b[oc] + sum(conv_w[oc, k] * pad[:, k:k + EMB] for k in range(3))
         for oc in range(NCH)], axis=1)                          # (L, 8, E)
    lstm_in = conv.reshape(conv.shape[0], -1)                    # (L, 8E)
    gates = lstm_in @ w_ih.T + b_ih + b_hh                       # h0 == 0
    i_g, f_g, g_g, o_g = jnp.split(gates, 4, axis=-1)
    c = jax.nn.sigmoid(i_g) * jnp.tanh(g_g)                      # + sigmoid(f)*c0 (==0)
    h = jax.nn.sigmoid(o_g) * jnp.tanh(c)
    logits = h[-1] @ w_out.T + b_out
    return jax.nn.softmax(logits, axis=0)[None, :]


def init_params(key):
    ks = jax.random.split(key, 8)
    emb_table = jax.random.normal(ks[0], (VOCAB, EMB), jnp.float32)
    emb_table = emb_table.at[0].set(0.0)                         # padding_idx=0
    kc = 1.0 / np.sqrt(1 * 3)
    conv_w = jax.random.uniform(ks[1], (NCH, 3), jnp.float32, -kc, kc)
    conv_b = jax.random.uniform(ks[2], (NCH,), jnp.float32, -kc, kc)
    kl = 1.0 / np.sqrt(HID)
    w_ih = jax.random.uniform(ks[3], (4 * HID, NCH * EMB), jnp.float32, -kl, kl)
    b_ih = jax.random.uniform(ks[4], (4 * HID,), jnp.float32, -kl, kl)
    b_hh = jax.random.uniform(ks[5], (4 * HID,), jnp.float32, -kl, kl)
    # NOTE: W_hh is mathematically irrelevant here because h0 == 0.
    w_out = jax.random.uniform(ks[6], (NCLS, HID), jnp.float32, -kl, kl)
    b_out = jax.random.uniform(ks[7], (NCLS,), jnp.float32, -kl, kl)
    return (emb_table, conv_w, conv_b, w_ih, b_ih, b_hh, w_out, b_out)


if __name__ == "__main__":
    key = jax.random.PRNGKey(0)
    pkey, skey = jax.random.split(key)
    params = init_params(pkey)
    seq = jax.random.randint(skey, (SEQ_LEN,), 0, VOCAB, dtype=jnp.int32)

    prepped = prepare_params(params)                 # one-time weight folding/packing
    out = jax.block_until_ready(cnn_lstm_forward(seq, prepped))
    ref = jax.block_until_ready(reference_forward(seq, params))

    assert out.shape == (1, NCLS), out.shape
    # bf16 weight slab -> relaxed tolerance (f32 reference).
    np.testing.assert_allclose(np.asarray(out), np.asarray(ref), rtol=2e-2, atol=2e-2)
    print("KERNEL_OK")
</pallas_src>

<mosaic_0001>
module attributes {stable_mosaic.version = 11 : i64} {
  func.func @cnn_lstm_kernel(%arg0: i32, %arg1: memref<8xi32, #tpu.memory_space<smem>>, %arg2: memref<1x1x128xbf16, #tpu.memory_space<vmem>>, %arg3: memref<272x128xbf16, #tpu.memory_space<vmem>>, %arg4: memref<8x128xf32, #tpu.memory_space<vmem>>) attributes {dimension_semantics = [#tpu.dimension_semantics<arbitrary>], iteration_bounds = array<i64: 1>, scalar_prefetch = 1 : i64, scratch_operands = 0 : i64, tpu.core_type = #tpu.core_type<tc>, window_params = [{transform_indices = @transform_0, window_bounds = array<i64: 1, 1, 128>}, {pipeline_mode = #tpu.pipeline_mode<synchronous>, transform_indices = @transform_1, window_bounds = array<i64: 272, 128>}, {pipeline_mode = #tpu.pipeline_mode<synchronous>, transform_indices = @transform_2, window_bounds = array<i64: 8, 128>}]} {
    %c0 = arith.constant 0 : index
    %c0_0 = arith.constant 0 : index
    %c0_1 = arith.constant 0 : index
    %0 = vector.load %arg2[%c0, %c0_0, %c0_1] : memref<1x1x128xbf16, #tpu.memory_space<vmem>>, vector<1x1x128xbf16>
    %1 = vector.shape_cast %0 : vector<1x1x128xbf16> to vector<1x128xbf16>
    %c0_2 = arith.constant 0 : index
    %c0_3 = arith.constant 0 : index
    %2 = vector.load %arg3[%c0_2, %c0_3] : memref<272x128xbf16, #tpu.memory_space<vmem>>, vector<128x128xbf16>
    %c128 = arith.constant 128 : index
    %c0_4 = arith.constant 0 : index
    %3 = vector.load %arg3[%c128, %c0_4] : memref<272x128xbf16, #tpu.memory_space<vmem>>, vector<128x128xbf16>
    %c256 = arith.constant 256 : index
    %c0_5 = arith.constant 0 : index
    %4 = vector.load %arg3[%c256, %c0_5] : memref<272x128xbf16, #tpu.memory_space<vmem>>, vector<1x128xbf16>
    %c264 = arith.constant 264 : index
    %c0_6 = arith.constant 0 : index
    %5 = vector.load %arg3[%c264, %c0_6] : memref<272x128xbf16, #tpu.memory_space<vmem>>, vector<1x128xbf16>
    %cst = arith.constant dense<0.000000e+00> : vector<1x128xf32>
    %6 = tpu.matmul %1, %2, %cst {dimension_numbers = #tpu.dot_dimension_numbers<[1], [0], [0], [1], [0, 0, 1, 1], [], []>} : vector<1x128xbf16>, vector<128x128xbf16>, vector<1x128xf32> -> vector<1x128xf32>
    %7 = arith.extf %4 : vector<1x128xbf16> to vector<1x128xf32>
    %8 = arith.addf %6, %7 : vector<1x128xf32>
    %9 = vector.shape_cast %8 : vector<1x128xf32> to vector<1x128xf32>
    %10 = vector.broadcast %9 : vector<1x128xf32> to vector<8x128xf32>
    %11 = arith.negf %10 : vector<8x128xf32>
    %12 = math.exp %11 : vector<8x128xf32>
    %cst_7 = arith.constant 1.000000e+00 : f32
    %13 = vector.broadcast %cst_7 : f32 to vector<8x128xf32>
    %14 = arith.addf %13, %12 : vector<8x128xf32>
    %15 = arith.divf %13, %14 : vector<8x128xf32>
    %16 = math.tanh %10 : vector<8x128xf32>
    %c112_i32 = arith.constant 112 : i32
    %17 = tpu.dynamic_rotate %16 by %c112_i32 dim 1 : vector<8x128xf32>, i32 -> vector<8x128xf32>
    %c96_i32 = arith.constant 96 : i32
    %18 = tpu.dynamic_rotate %15 by %c96_i32 dim 1 : vector<8x128xf32>, i32 -> vector<8x128xf32>
    %19 = arith.mulf %15, %17 : vector<8x128xf32>
    %20 = math.tanh %19 : vector<8x128xf32>
    %21 = arith.mulf %18, %20 : vector<8x128xf32>
    %22 = tpu.iota {dimensions = array<i32: 1>} : vector<8x128xi32>
    %c16_i32 = arith.constant 16 : i32
    %23 = vector.broadcast %c16_i32 : i32 to vector<8x128xi32>
    %24 = arith.cmpi slt, %22, %23 : vector<8x128xi32>
    %cst_8 = arith.constant 0.000000e+00 : f32
    %25 = vector.broadcast %cst_8 : f32 to vector<8x128xf32>
    %26 = arith.select %24, %21, %25 : vector<8x128xi1>, vector<8x128xf32>
    %27 = arith.truncf %26 : vector<8x128xf32> to vector<8x128xbf16>
    %cst_9 = arith.constant dense<0.000000e+00> : vector<8x128xf32>
    %28 = tpu.matmul %27, %3, %cst_9 {dimension_numbers = #tpu.dot_dimension_numbers<[1], [0], [0], [1], [0, 0, 1, 1], [], []>} : vector<8x128xbf16>, vector<128x128xbf16>, vector<8x128xf32> -> vector<8x128xf32>
    %29 = arith.extf %5 : vector<1x128xbf16> to vector<1x128xf32>
    %30 = vector.broadcast %29 : vector<1x128xf32> to vector<8x128xf32>
    %31 = arith.addf %28, %30 : vector<8x128xf32>
    %cst_10 = arith.constant dense<0xFF800000> : vector<8xf32>
    %32 = vector.multi_reduction <maximumf>, %31, %cst_10 [1] : vector<8x128xf32> to vector<8xf32>
    %33 = vector.shape_cast %32 : vector<8xf32> to vector<8x1xf32>
    %34 = vector.broadcast %33 : vector<8x1xf32> to vector<8x128xf32>
    %35 = arith.subf %31, %34 : vector<8x128xf32>
    %36 = math.exp %35 : vector<8x128xf32>
    %cst_11 = arith.constant dense<0.000000e+00> : vector<8xf32>
    %37 = vector.multi_reduction <add>, %36, %cst_11 [1] : vector<8x128xf32> to vector<8xf32>
    %38 = vector.shape_cast %37 : vector<8xf32> to vector<8x1xf32>
    %39 = vector.broadcast %38 : vector<8x1xf32> to vector<8x128xf32>
    %40 = arith.divf %36, %39 : vector<8x128xf32>
    %c0_12 = arith.constant 0 : index
    %c0_13 = arith.constant 0 : index
    %41 = vector.load %arg4[%c0_12, %c0_13] : memref<8x128xf32, #tpu.memory_space<vmem>>, vector<8x128xf32>
    tpu.vector_store %arg4[%c0_12, %c0_13], %40 {strides = array<i32>} : memref<8x128xf32, #tpu.memory_space<vmem>>, vector<8x128xf32>,
    return
  }
  func.func @transform_0(%arg0: i32, %arg1: memref<8xi32, #tpu.memory_space<smem>>) -> (i32, i32, i32) {
    %c7 = arith.constant 7 : index
    %0 = memref.load %arg1[%c7] : memref<8xi32, #tpu.memory_space<smem>>
    %c0_i32 = arith.constant 0 : i32
    %c0_i32_0 = arith.constant 0 : i32
    %c0_i32_1 = arith.constant 0 : i32
    return %0, %c0_i32, %c0_i32_0 : i32, i32, i32
  }
  func.func @transform_1(%arg0: i32, %arg1: memref<8xi32, #tpu.memory_space<smem>>) -> (i32, i32) {
    %c0_i32 = arith.constant 0 : i32
    %c0_i32_0 = arith.constant 0 : i32
    %c0_i32_1 = arith.constant 0 : i32
    return %c0_i32, %c0_i32_0 : i32, i32
  }
  func.func @transform_2(%arg0: i32, %arg1: memref<8xi32, #tpu.memory_space<smem>>) -> (i32, i32) {
    %c0_i32 = arith.constant 0 : i32
    %c0_i32_0 = arith.constant 0 : i32
    %c0_i32_1 = arith.constant 0 : i32
    return %c0_i32, %c0_i32_0 : i32, i32
  }
}

</mosaic_0001>

<llo_original>
// kernel: cnn_lstm_forward.1
$region0: #{cnn_lstm_forward.1}
  #allocation0 [shape = 'u32[]', space=smem, size = 0x4, offset = 0x4, fixed_abs, tag = 'smem constant byte address 0x4 - core index']
  #allocation1 [shape = 'u32[144,128]{1,0:T(1,128)}', space=vmem, size = 0x12000, scoped, tag = 'internal scratch']
  #allocation2 [shape = 's32[1]{0}', space=sflag, size = 0x4, scoped, tag = 'scoped memory for cnn_lstm_forward.1']
  #allocation3 [shape = 'u8[512]{0}', space=smem, size = 0x200, scoped, tag = 'prefetched SMEM operand 0']
  %s0 = inlined_call_operand.vmem [shape: s32[8], index: 0, kind: input, shape index: {}]
  %s1 = inlined_call_operand.vmem [shape: bf16[50,1,128], index: 1, kind: input, shape index: {}]
  %s2 = inlined_call_operand.hbm [shape: bf16[272,128], index: 2, kind: input, shape index: {}]
  %s3 = inlined_call_operand.vmem [shape: f32[8,128], index: 3, kind: output, shape index: {}]
  %s4 = sld [smem:[#allocation0]]
  $region22: #{cnn_lstm_forward.1} parent=0
    _
  %s6 = ssub.s32 1, %s4
  %s7 = scalar_select 0, %s6, %s4
  %s8 = sshll.u32 %s0, 4
  %s9 = int_to_ptr.vmem [resolvable:$true] %s8
  %11 = dma.vmem_to_smem %s9, 16, [#allocation3], [#allocation2]
  %12 = dma.done [#allocation2], 16
  %13 = sfence
  $region1: #{cnn_lstm_forward.1} parent=0
    #allocation4 [shape = 'u8[69632]{0}', space=vmem, size = 0x11000, scoped, tag = 'input window, operand 2, single buffered']
    #allocation5 [shape = 's32[1]{0}', space=sflag, size = 0x4, scoped, tag = 'scoped memory for cnn_lstm_forward.1']
    %14 = vsyncpa [#allocation5], 0
    // Predicated region
    $region2: #{cnn_lstm_forward.1} parent=1 // pred_check
      _
    $region3: #{cnn_lstm_forward.1} parent=1 // pred_check_branch
      %16 = sbr.rel (0) target = $region5
    $region4: #{cnn_lstm_forward.1} parent=1 // pred_region
      %s17 = sld [smem:[#allocation3 + $0x7]]
      %p18 = scmp.lt.s32.totalorder %s17, 49
      %s19 = scalar_select %p18, %s17, 49
      %s20 = scalar_lea.vmem %s1, %s19
      %s21 = sld [smem:[#allocation3 + $0x7]]
    $region5: #{cnn_lstm_forward.1} parent=1 // pred_fallthru
      _
    // Predicated region
    $region6: #{cnn_lstm_forward.1} parent=1 // pred_check
      _
    $region7: #{cnn_lstm_forward.1} parent=1 // pred_check_branch
      %23 = sbr.rel (0) target = $region9
    $region8: #{cnn_lstm_forward.1} parent=1 // pred_region
      %s25 = ssub.s32 2176, 2176
      %26 = vsyncadd [#allocation5], %s25
      %s27 = sshll.u32 [#allocation4], 4
      %s28 = int_to_ptr.vmem [resolvable:$true] %s27
      %33 = dma.hbm_to_vmem [thread:$0]  %s2, 2176, %s28, [#allocation5], 64, 64, 4
    $region9: #{cnn_lstm_forward.1} parent=1 // pred_fallthru
      _
    // Predicated region
    $region10: #{cnn_lstm_forward.1} parent=1 // pred_check
      _
    $region11: #{cnn_lstm_forward.1} parent=1 // pred_check_branch
      %35 = sbr.rel (0) target = $region13
    $region12: #{cnn_lstm_forward.1} parent=1 // pred_region
      %36 = dma.done [#allocation5], 2176
    $region13: #{cnn_lstm_forward.1} parent=1 // pred_fallthru
      _
    %s37 = sld [smem:[#allocation3 + $0x7]]
    %p38 = scmp.lt.s32.totalorder %s37, 49
    %s39 = scalar_select %p38, %s37, 49
    %s40 = scalar_lea.vmem %s1, %s39
    %s41 = sld [smem:[#allocation3 + $0x7]]
    %p42 = scmp.lt.s32.totalorder %s41, 49
    %s43 = scalar_select %p42, %s41, 49
    %s44 = scalar_lea.vmem %s1, %s43
    %s45 = sld [smem:[#allocation3 + $0x7]]
    %v47 = vld [vmem:[%s44] sm:$0x1]
    %v48 = vld [vmem:[#allocation4] sm:$0xf]
    %v49 = vld [vmem:[#allocation4 + $0x4] sm:$0xf]
    %v50 = vld [vmem:[#allocation4 + $0x8] sm:$0xf]
    %v51 = vld [vmem:[#allocation4 + $0xc] sm:$0xf]
    %v52 = vld [vmem:[#allocation4 + $0x10] sm:$0xf]
    %v53 = vld [vmem:[#allocation4 + $0x14] sm:$0xf]
    %v54 = vld [vmem:[#allocation4 + $0x18] sm:$0xf]
    %v55 = vld [vmem:[#allocation4 + $0x1c] sm:$0xf]
    %v56 = vld [vmem:[#allocation4 + $0x20] sm:$0xf]
    %v57 = vld [vmem:[#allocation4 + $0x24] sm:$0xf]
    %v58 = vld [vmem:[#allocation4 + $0x28] sm:$0xf]
    %v59 = vld [vmem:[#allocation4 + $0x2c] sm:$0xf]
    %v60 = vld [vmem:[#allocation4 + $0x30] sm:$0xf]
    %v61 = vld [vmem:[#allocation4 + $0x34] sm:$0xf]
    %v62 = vld [vmem:[#allocation4 + $0x38] sm:$0xf]
    %v63 = vld [vmem:[#allocation4 + $0x3c] sm:$0xf]
    %v64 = vld [vmem:[#allocation4 + $0x40] sm:$0xf]
    %v65 = vld [vmem:[#allocation4 + $0x44] sm:$0xf]
    %v66 = vld [vmem:[#allocation4 + $0x48] sm:$0xf]
    %v67 = vld [vmem:[#allocation4 + $0x4c] sm:$0xf]
    %v68 = vld [vmem:[#allocation4 + $0x50] sm:$0xf]
    %v69 = vld [vmem:[#allocation4 + $0x54] sm:$0xf]
    %v70 = vld [vmem:[#allocation4 + $0x58] sm:$0xf]
    %v71 = vld [vmem:[#allocation4 + $0x5c] sm:$0xf]
    %v72 = vld [vmem:[#allocation4 + $0x60] sm:$0xf]
    %v73 = vld [vmem:[#allocation4 + $0x64] sm:$0xf]
    %v74 = vld [vmem:[#allocation4 + $0x68] sm:$0xf]
    %v75 = vld [vmem:[#allocation4 + $0x6c] sm:$0xf]
    %v76 = vld [vmem:[#allocation4 + $0x70] sm:$0xf]
    %v77 = vld [vmem:[#allocation4 + $0x74] sm:$0xf]
    %v78 = vld [vmem:[#allocation4 + $0x78] sm:$0xf]
    %v79 = vld [vmem:[#allocation4 + $0x7c] sm:$0xf]
    %v80 = vld [vmem:[#allocation4 + $0x80] sm:$0x1]
    %v81 = vld [vmem:[#allocation4 + $0x84] sm:$0x1]
    %v82 = vunpack.c.l.bf16 %v80
    %v99 = vunpack.c.l.b16 %v48
    %v100 = vunpack.c.l.b16 %v49
    %v101 = vunpack.c.l.b16 %v50
    %v102 = vunpack.c.l.b16 %v51
    %v103 = vunpack.c.l.b16 %v52
    %v104 = vunpack.c.l.b16 %v53
    %v105 = vunpack.c.l.b16 %v54
    %v106 = vunpack.c.l.b16 %v55
    %v107 = vunpack.c.l.b16 %v56
    %v108 = vunpack.c.l.b16 %v57
    %v109 = vunpack.c.l.b16 %v58
    %v110 = vunpack.c.l.b16 %v59
    %v111 = vunpack.c.l.b16 %v60
    %v112 = vunpack.c.l.b16 %v61
    %v113 = vunpack.c.l.b16 %v62
    %v114 = vunpack.c.l.b16 %v63
    %v115 = vpack.c.b16 %v100, %v99
    %v116 = vpack.c.b16 %v102, %v101
    %v117 = vpack.c.b16 %v104, %v103
    %v118 = vpack.c.b16 %v106, %v105
    %v119 = vpack.c.b16 %v108, %v107
    %v120 = vpack.c.b16 %v110, %v109
    %v121 = vpack.c.b16 %v112, %v111
    %v122 = vpack.c.b16 %v114, %v113
    %131 = vmatprep.subr.bf16.mxu0 0
    %132 = vmatpush1.bf16.msra.mxu0 %v122
    %133 = vmatprep.subr.bf16.mxu0 0
    %134 = vmatpush1.bf16.msra.mxu0 %v121
    %135 = vmatprep.subr.bf16.mxu0 0
    %136 = vmatpush1.bf16.msra.mxu0 %v120
    %137 = vmatprep.subr.bf16.mxu0 0
    %138 = vmatpush1.bf16.msra.mxu0 %v119
    %139 = vmatprep.subr.bf16.mxu0 0
    %140 = vmatpush1.bf16.msra.mxu0 %v118
    %141 = vmatprep.subr.bf16.mxu0 0
    %142 = vmatpush1.bf16.msra.mxu0 %v117
    %143 = vmatprep.subr.bf16.mxu0 0
    %144 = vmatpush1.bf16.msra.mxu0 %v116
    %145 = vmatprep.subr.bf16.mxu0 0
    %146 = vmatpush1.bf16.msra.mxu0 %v115
    %147 = vmatprep.subr.bf16.mxu0 0
    %148 = vmatpush2.bf16.msra.mxu0 0
    %149 = vmatprep.subr.bf16.mxu0 0
    %150 = vmatpush2.bf16.msra.mxu0 0
    %151 = vmatprep.subr.bf16.mxu0 0
    %152 = vmatpush2.bf16.msra.mxu0 0
    %153 = vmatprep.subr.bf16.mxu0 0
    %154 = vmatpush2.bf16.msra.mxu0 0
    %155 = vmatprep.subr.bf16.mxu0 0
    %156 = vmatpush2.bf16.msra.mxu0 0
    %157 = vmatprep.subr.bf16.mxu0 0
    %158 = vmatpush2.bf16.msra.mxu0 0
    %159 = vmatprep.subr.bf16.mxu0 0
    %160 = vmatpush2.bf16.msra.mxu0 0
    %161 = vmatprep.subr.bf16.mxu0 0
    %162 = vmatpush2.bf16.msra.mxu0 0
    %163 = vmatprep.mubr.bf16.mxu0 0
    %164 = vmatmul.mubr.bf16.gmra.mxu0 %v47
    %v165 = vpop.f32.mrf.mxu0
    %v166 = vadd.f32 %v82, %v165
    %v167 = vpop.f32.mrf.mxu0
    %v168 = vpop.f32.mrf.mxu0
    %v169 = vpop.f32.mrf.mxu0
    %170 = vdwg.mxu0
    %v171 = vlaneseq
    %v172 = vshrl.u32 %v171, 7
    %v173 = vsub.s32 0, %v172
    %v174 = vrot.slane %v166, %v173
    %v175 = vxor.u32 %v174, 2147483648
    %v176 = vmul.f32 %v175, 1.442695
    %v177 = vpow.pop %v176
    %v178 = vadd.f32 %v177, 1.0
    %v179 = vrcp.pop %v178
    %v180 = vmul.f32 1.0, %v179
    %v181 = vtanh.pop %v174
    %182 = vrot.lane.b32.xlu0 %v181, 112
    %v183 = vpop.permute.xlu0 %182
    %184 = vrot.lane.b32.xlu0 %v180, 96
    %v185 = vpop.permute.xlu0 %184
    %v186 = vmul.f32 %v180, %v183
    %v187 = vtanh.pop %v186
    %v188 = vmul.f32 %v185, %v187
    %v189 = vlaneseq
    %v190 = vand.u32 %v189, 127
    %vm191 = vcmp.lt.s32.totalorder %v190, 16
    %v192 = vsel %vm191, %v188, 0.0
    %v193 = vpack.c.bf16 %v192, %v192
    %v194 = vunpack.c.l.bf16 %v81
    %v195 = vlaneseq
    %v196 = vshrl.u32 %v195, 7
    %v197 = vsub.s32 0, %v196
    %v198 = vrot.slane %v194, %v197
    %v215 = vunpack.c.l.b16 %v64
    %v216 = vunpack.c.l.b16 %v65
    %v217 = vunpack.c.l.b16 %v66
    %v218 = vunpack.c.l.b16 %v67
    %v219 = vunpack.c.l.b16 %v68
    %v220 = vunpack.c.l.b16 %v69
    %v221 = vunpack.c.l.b16 %v70
    %v222 = vunpack.c.l.b16 %v71
    %v223 = vunpack.c.l.b16 %v72
    %v224 = vunpack.c.l.b16 %v73
    %v225 = vunpack.c.l.b16 %v74
    %v226 = vunpack.c.l.b16 %v75
    %v227 = vunpack.c.l.b16 %v76
    %v228 = vunpack.c.l.b16 %v77
    %v229 = vunpack.c.l.b16 %v78
    %v230 = vunpack.c.l.b16 %v79
    %v231 = vpack.c.b16 %v216, %v215
    %v232 = vpack.c.b16 %v218, %v217
    %v233 = vpack.c.b16 %v220, %v219
    %v234 = vpack.c.b16 %v222, %v221
    %v235 = vpack.c.b16 %v224, %v223
    %v236 = vpack.c.b16 %v226, %v225
    %v237 = vpack.c.b16 %v228, %v227
    %v238 = vpack.c.b16 %v230, %v229
    %247 = vmatprep.subr.bf16.mxu0 0
    %248 = vmatpush1.bf16.msra.mxu0 %v238
    %249 = vmatprep.subr.bf16.mxu0 0
    %250 = vmatpush1.bf16.msra.mxu0 %v237
    %251 = vmatprep.subr.bf16.mxu0 0
    %252 = vmatpush1.bf16.msra.mxu0 %v236
    %253 = vmatprep.subr.bf16.mxu0 0
    %254 = vmatpush1.bf16.msra.mxu0 %v235
    %255 = vmatprep.subr.bf16.mxu0 0
    %256 = vmatpush1.bf16.msra.mxu0 %v234
    %257 = vmatprep.subr.bf16.mxu0 0
    %258 = vmatpush1.bf16.msra.mxu0 %v233
    %259 = vmatprep.subr.bf16.mxu0 0
    %260 = vmatpush1.bf16.msra.mxu0 %v232
    %261 = vmatprep.subr.bf16.mxu0 0
    %262 = vmatpush1.bf16.msra.mxu0 %v231
    %263 = vmatprep.subr.bf16.mxu0 0
    %264 = vmatpush2.bf16.msra.mxu0 0
    %265 = vmatprep.subr.bf16.mxu0 0
    %266 = vmatpush2.bf16.msra.mxu0 0
    %267 = vmatprep.subr.bf16.mxu0 0
    %268 = vmatpush2.bf16.msra.mxu0 0
    %269 = vmatprep.subr.bf16.mxu0 0
    %270 = vmatpush2.bf16.msra.mxu0 0
    %271 = vmatprep.subr.bf16.mxu0 0
    %272 = vmatpush2.bf16.msra.mxu0 0
    %273 = vmatprep.subr.bf16.mxu0 0
    %274 = vmatpush2.bf16.msra.mxu0 0
    %275 = vmatprep.subr.bf16.mxu0 0
    %276 = vmatpush2.bf16.msra.mxu0 0
    %277 = vmatprep.subr.bf16.mxu0 0
    %278 = vmatpush2.bf16.msra.mxu0 0
    %279 = vmatprep.mubr.bf16.mxu0 0
    %280 = vmatmul.mubr.bf16.gmra.mxu0 %v193
    %v281 = vpop.f32.mrf.mxu0
    %v282 = vadd.f32 %v198, %v281
    %v283 = vpop.f32.mrf.mxu0
    %v284 = vpop.f32.mrf.mxu0
    %v285 = vpop.f32.mrf.mxu0
    %286 = vdwg.mxu0
    %287 = vmax.xlane.f32.xlu0 %v282
    %v288 = vpop.xlane.xlu0 %287
    %v289 = vsub.f32 %v282, %v288
    %v290 = vmul.f32 %v289, 1.442695
    %v291 = vpow.pop %v290
    %292 = vadd.xlane.f32.xlu0 %v291
    %v293 = vpop.xlane.xlu0 %292
    %v294 = vrcp.pop %v293
    %v295 = vmul.f32 %v291, %v294
    %296 = vst [vmem:[%s3] sm:$0xff] %v295
    // Predicated region
    $region14: #{cnn_lstm_forward.1} parent=1 // pred_check
      _
    $region15: #{cnn_lstm_forward.1} parent=1 // pred_check_branch
      %298 = sbr.rel (0) target = $region17
    $region16: #{cnn_lstm_forward.1} parent=1 // pred_region
      _
    $region17: #{cnn_lstm_forward.1} parent=1 // pred_fallthru
      _
    // Predicated region
    $region18: #{cnn_lstm_forward.1} parent=1 // pred_check
      _
    $region19: #{cnn_lstm_forward.1} parent=1 // pred_check_branch
      %300 = sbr.rel (0) target = $region21
    $region20: #{cnn_lstm_forward.1} parent=1 // pred_region
      _
    $region21: #{cnn_lstm_forward.1} parent=1 // pred_fallthru
      _
    %301 = vsyncpa [#allocation5], 1

</llo_original>
